<compile_context>
chip_gen: v7x
topology: tpu7x:2x2x1
jax: 0.10.0
libtpu: 0.0.40
codegen_flags: <defaults>
</compile_context>

<pallas_src>
import functools

import jax
import jax.numpy as jnp
from jax.experimental import pallas as pl
from jax.experimental.pallas import tpu as pltpu

BN_EPS = 1e-5  # torch.nn.BatchNorm1d default eps


def _cdiv(a, b):
    return -(-a // b)


# ---------------------------------------------------------------------------
# Pass A kernel: projection (MXU) + per-tile BN partials (+ per-segment raw sums)
# ---------------------------------------------------------------------------
def _proj_stats_kernel(img_ref, txt_t_ref, raw_ref, stats_ref, *maybe_seg_ref,
                       seg_length):
    # (TILE_N, D) @ (D, C_pad): bf16 tiles straight off HBM, f32 accumulation.
    raw = jnp.dot(img_ref[...], txt_t_ref[...], preferred_element_type=jnp.float32)
    raw_ref[...] = raw

    # Per-tile BN partials: row 0 = sum, row 1 = sum of squares, rows 2..7 zero
    # (8-row block keeps the stats output (8,128)-aligned and lane-dense).
    s = jnp.sum(raw, axis=0, keepdims=True)
    ss = jnp.sum(raw * raw, axis=0, keepdims=True)
    row = jax.lax.broadcasted_iota(jnp.int32, stats_ref.shape, 0)
    stats_ref[...] = jnp.where(row == 0, s, 0.0) + jnp.where(row == 1, ss, 0.0)

    # Per-segment raw sums via seg_length strided-sublane reads (rows l, l+L, ...
    # are the l-th member of every segment).  No selection matmul, no MXU work.
    if seg_length is not None:
        (seg_ref,) = maybe_seg_ref
        n_seg_t = raw.shape[0] // seg_length
        acc = raw_ref[pl.ds(0, n_seg_t, stride=seg_length), :]
        for l in range(1, seg_length):
            acc = acc + raw_ref[pl.ds(l, n_seg_t, stride=seg_length), :]
        seg_ref[...] = acc


# ---------------------------------------------------------------------------
# Tiling / wrapper
# ---------------------------------------------------------------------------
def _choose_tile_n(n, d, c_pad, seg_length, in_itemsize, *,
                   max_tile=2048, vmem_budget_bytes=40 * 1024 * 1024):
    """Largest N-tile (multiple of 8*seg_length) whose double-buffered working set
    fits the VMEM budget (v7x: 64 MiB physical), capped at max_tile, preferring
    >= 2 grid steps so both v7x TensorCores get work."""
    group = 8 * (seg_length if seg_length else 1)

    def step_bytes(t):
        per_step = t * d * in_itemsize + t * c_pad * 4 + 8 * c_pad * 4
        if seg_length:
            per_step += (t // seg_length) * c_pad * 4
        # double-buffered per-step tiles + (conservatively doubled) resident weight
        return 2 * per_step + 2 * d * c_pad * in_itemsize

    t = max(group, min((max_tile // group) * group, _cdiv(n, group) * group))
    while t > group and step_bytes(t) > vmem_budget_bytes:
        t -= group
    if _cdiv(n, t) < 2 and t > group:
        half = max(group, ((t // 2) // group) * group)
        if _cdiv(n, half) >= 2:
            t = half
    return t


def _prepare_text(text_features, ncentroid, normal_id, c_pad):
    """Drop normal class, center, L2-normalize, zero-pad to c_pad, transpose -> (D, c_pad)."""
    txt = jnp.concatenate(
        [text_features[:normal_id], text_features[normal_id + 1:]], axis=0)
    txt_c = txt.astype(jnp.float32) - ncentroid.astype(jnp.float32)
    nrm = jnp.sqrt(jnp.sum(txt_c * txt_c, axis=-1, keepdims=True))
    txt_n = txt_c / jnp.maximum(nrm, 1e-12)   # guard degenerate zero-norm rows
    n_cls = txt_n.shape[0]
    txt_n_pad = jnp.pad(txt_n, ((0, c_pad - n_cls), (0, 0)))
    return txt_n_pad.T                        # zero rows -> zero padded logit columns


def project_bn_stats(img, txt_t_pad, *, seg_length=None, tile_n=None,
                     matmul_dtype=jnp.bfloat16,
                     vmem_limit_bytes=48 * 1024 * 1024):
    """Pass A: raw = img @ txt_t (uncentered; the bias cancels under batch-stat BN),
    plus BN batch-statistic partials and (optionally) per-segment raw sums.

    Returns (raw (n_pad, c_pad) f32, mean (c_pad,) f32, inv_std (c_pad,) f32,
             seg_raw (n_pad // seg_length, c_pad) f32 or None).
    Rows past the true n (zero padding) must be sliced off by the caller.
    """
    n, d = img.shape
    c_pad = txt_t_pad.shape[1]
    group = seg_length if seg_length else 1
    in_itemsize = jnp.dtype(matmul_dtype).itemsize
    if tile_n is None:
        tile_n = _choose_tile_n(n, d, c_pad, seg_length, in_itemsize)
    assert tile_n % (8 * group) == 0, "tile must be a multiple of 8*seg_length"

    # Zero-pad N so every tile is full.  Zero rows add 0 to sum / sum-of-squares and
    # we divide by the true n below, so the batch statistics stay exact.
    n_pad = _cdiv(n, tile_n) * tile_n
    img_p = img.astype(matmul_dtype)
    if n_pad != n:
        img_p = jnp.pad(img_p, ((0, n_pad - n), (0, 0)))
    txt_p = txt_t_pad.astype(matmul_dtype)
    num_tiles = n_pad // tile_n

    out_shape = [jax.ShapeDtypeStruct((n_pad, c_pad), jnp.float32),
                 jax.ShapeDtypeStruct((num_tiles * 8, c_pad), jnp.float32)]
    out_specs = [pl.BlockSpec((tile_n, c_pad), lambda i: (i, 0)),
                 pl.BlockSpec((8, c_pad), lambda i: (i, 0))]
    if seg_length is not None:
        out_shape.append(
            jax.ShapeDtypeStruct((n_pad // seg_length, c_pad), jnp.float32))
        out_specs.append(
            pl.BlockSpec((tile_n // seg_length, c_pad), lambda i: (i, 0)))

    bytes_acc = (n_pad * d * in_itemsize + d * c_pad * in_itemsize
                 + n_pad * c_pad * 4 + num_tiles * 8 * c_pad * 4
                 + (n_pad // seg_length * c_pad * 4 if seg_length else 0))

    outs = pl.pallas_call(
        functools.partial(_proj_stats_kernel, seg_length=seg_length),
        grid=(num_tiles,),
        out_shape=tuple(out_shape),
        in_specs=[pl.BlockSpec((tile_n, d), lambda i: (i, 0)),
                  # resident weight: same block every step -> fetched once.
                  pl.BlockSpec((d, c_pad), lambda i: (0, 0))],
        out_specs=tuple(out_specs),
        compiler_params=pltpu.CompilerParams(
            dimension_semantics=("parallel",),
            vmem_limit_bytes=vmem_limit_bytes),
        cost_estimate=pl.CostEstimate(
            flops=2 * n_pad * d * c_pad, transcendentals=0,
            bytes_accessed=bytes_acc),
    )(img_p, txt_p)

    raw = outs[0]
    stats = outs[1].reshape(num_tiles, 8, c_pad)
    seg_raw = outs[2] if seg_length is not None else None

    # Tiny host-side reduce of the per-tile partials (keeps the grid axis parallel).
    total = jnp.sum(stats[:, 0, :], axis=0)
    total_sq = jnp.sum(stats[:, 1, :], axis=0)
    mean = total / n
    var = jnp.maximum(total_sq / n - mean * mean, 0.0)   # biased batch variance
    inv_std = jax.lax.rsqrt(var + BN_EPS)
    return raw, mean, inv_std, seg_raw


# ---------------------------------------------------------------------------
# SelectorModel forward (top/bottom-k selection glue in plain JAX)
# ---------------------------------------------------------------------------
def selector_forward(image_features, text_features, labels, ncentroid, *,
                     normal_id, num_segments, seg_length, num_topk, num_bottomk,
                     select_idx_dropout_topk=0.0, select_idx_dropout_bottomk=0.0,
                     test_mode=False, tile_n=None, matmul_dtype=jnp.bfloat16):
    d = image_features.shape[-1]
    img = image_features.reshape(-1, d)
    n = img.shape[0]
    n_cls = text_features.shape[0] - 1
    c_pad = ((n_cls + 127) // 128) * 128
    txt_t = _prepare_text(text_features, ncentroid, normal_id, c_pad)

    if test_mode:
        raw, mean, inv_std, _ = project_bn_stats(
            img, txt_t, seg_length=None, tile_n=tile_n, matmul_dtype=matmul_dtype)
        # BN application on the n_cls slice only (tiny, fused by XLA): avoids ever
        # writing padded (n, c_pad) normalized logits.
        return (raw[:n, :n_cls] - mean[:n_cls]) * inv_std[:n_cls]

    raw, mean, inv_std, seg_raw = project_bn_stats(
        img, txt_t, seg_length=seg_length, tile_n=tile_n, matmul_dtype=matmul_dtype)
    logits = (raw[:n, :n_cls] - mean[:n_cls]) * inv_std[:n_cls]        # (N, n_cls)

    t = num_segments * seg_length
    b = n // t
    b2 = b // 2
    n_seg = n // seg_length
    # BN is linear -> per-segment sums of BN'd logits from the raw segment sums.
    seg_sum = ((seg_raw[:n_seg, :n_cls] - seg_length * mean[:n_cls])
               * inv_std[:n_cls]).reshape(b, num_segments, n_cls)
    logits4 = logits.reshape(b, num_segments, seg_length, n_cls)

    # generate_mask: with dropout == 0.0 bernoulli(1) is deterministically all ones.
    # TODO(synk): for dropout > 0 draw the per-(video, segment) bernoulli mask.
    topk_mask = jnp.ones((b, num_segments, n_cls), jnp.float32)
    bottomk_mask = topk_mask   # dropout_topk == dropout_bottomk path of generate_mask

    alabels = labels[:b2]
    alabels = jnp.where(alabels > normal_id, alabels - 1, alabels)

    gather_segments = jax.vmap(lambda x, ii: x[ii])        # (S,L,C),(k) -> (k,L,C)
    pick_class_col = jax.vmap(lambda s, lab: s[:, lab])    # (S,C),()   -> (S,)

    # ----------------------- top-k selection -----------------------
    drop_top = jnp.where(topk_mask == 0, -1000000.0, seg_sum)
    a_scores = pick_class_col(drop_top[:b2], alabels)               # (B/2, S)
    _, idx_topk_abn = jax.lax.top_k(a_scores, num_topk)             # (B/2, k)
    n_scores = jnp.sum(drop_top[b2:], axis=-1)                      # (B/2, S)
    _, idx_topk_nor = jax.lax.top_k(n_scores, num_topk)             # (B/2, k)
    logits_topk = jnp.concatenate([
        gather_segments(logits4[:b2], idx_topk_abn).reshape(-1, n_cls),
        gather_segments(logits4[b2:], idx_topk_nor).reshape(-1, n_cls)],
        axis=0)                                                     # (B*k*L, n_cls)

    # --------------------- bottom-k selection ----------------------
    drop_bot = jnp.where(bottomk_mask == 0, 1000000.0, seg_sum)
    a_scores_b = pick_class_col(drop_bot[:b2], alabels)
    _, idx_bottomk_abn = jax.lax.top_k(-a_scores_b, num_bottomk)
    n_scores_b = jnp.sum(drop_bot[b2:], axis=-1)
    _, idx_bottomk_nor = jax.lax.top_k(-n_scores_b, num_bottomk)
    logits_bottomk = jnp.concatenate([
        gather_segments(logits4[:b2], idx_bottomk_abn).reshape(-1, n_cls),
        gather_segments(logits4[b2:], idx_bottomk_nor).reshape(-1, n_cls)],
        axis=0)                                                     # (B*k*L, n_cls)

    return (logits, logits_topk, logits_bottomk,
            idx_topk_abn, idx_topk_nor, idx_bottomk_abn)


# ---------------------------------------------------------------------------
if __name__ == "__main__":
    key = jax.random.PRNGKey(0)
    k1, k2, k3 = jax.random.split(key, 3)

    # small, forward-consistent shapes
    B, S, L, D = 4, 8, 2, 32          # videos, num_segments, seg_length, feat dim
    classnames = ["fight", "shoot", "normal", "steal", "arson"]
    normal_id = 2
    n_total = len(classnames)
    n_cls = n_total - 1
    num_topk, num_bottomk = 3, 3

    image_features = jax.random.normal(k1, (B, S * L, D), dtype=jnp.float32)
    text_features = jax.random.normal(k2, (n_total, D), dtype=jnp.float32)
    ncentroid = jax.random.normal(k3, (D,), dtype=jnp.float32)
    labels = jnp.array([0, 4, normal_id, normal_id], dtype=jnp.int32)  # abn, abn, nor, nor

    common = dict(normal_id=normal_id, num_segments=S, seg_length=L,
                  num_topk=num_topk, num_bottomk=num_bottomk,
                  select_idx_dropout_topk=0.0, select_idx_dropout_bottomk=0.0)
    run_train = jax.jit(functools.partial(selector_forward, test_mode=False, **common))
    run_test = jax.jit(functools.partial(selector_forward, test_mode=True, **common))

    outs = jax.block_until_ready(
        run_train(image_features, text_features, labels, ncentroid))
    logits_eval = jax.block_until_ready(
        run_test(image_features, text_features, labels, ncentroid))

    img = image_features.reshape(-1, D)
    n = img.shape[0]
    c_pad = ((n_cls + 127) // 128) * 128
    txt_t = _prepare_text(text_features, ncentroid, normal_id, c_pad)

    # (1) tight check vs a reference following the same numeric path
    #     (bf16 MXU inputs, no image centering, batch-stat BN).
    raw_ref = jnp.dot(img.astype(jnp.bfloat16), txt_t.astype(jnp.bfloat16),
                      preferred_element_type=jnp.float32)[:, :n_cls]
    tight = ((raw_ref - raw_ref.mean(axis=0))
             * jax.lax.rsqrt(raw_ref.var(axis=0) + BN_EPS))
    assert jnp.allclose(outs[0], tight, atol=2e-3), "logits mismatch (same-precision ref)"

    # (2) loose check vs the full-f32 torch math (image centering included; it
    #     cancels exactly under batch-stat affine=False BN).  bf16-input-limited tol.
    txt = jnp.concatenate(
        [text_features[:normal_id], text_features[normal_id + 1:]], axis=0)
    img_c = img - ncentroid
    txt_c = txt - ncentroid
    txt_n = txt_c / jnp.linalg.norm(txt_c, axis=-1, keepdims=True)
    ref_raw = img_c @ txt_n.T
    ref = (ref_raw - ref_raw.mean(0)) / jnp.sqrt(ref_raw.var(0) + BN_EPS)
    assert jnp.allclose(outs[0], ref, atol=0.1), "logits mismatch (f32 torch-math ref)"

    # (3) test-mode logits equal train-mode logits (same batch-stat BN path).
    assert jnp.allclose(outs[0], logits_eval, atol=1e-5)

    # (4) fused per-segment raw sums + BN-linearity fixup vs reference.
    raw_p, mean_p, inv_p, seg_raw = jax.block_until_ready(
        jax.jit(functools.partial(project_bn_stats, seg_length=L))(img, txt_t))
    seg_bn = (seg_raw[: n // L, :n_cls] - L * mean_p[:n_cls]) * inv_p[:n_cls]
    ref_seg = tight.reshape(B, S, L, n_cls).sum(axis=2).reshape(-1, n_cls)
    assert jnp.allclose(seg_bn, ref_seg, atol=5e-3), "segment-sum mismatch"

    # (5) exercise the N-padding path (tile_n=48 -> n padded 64 -> 96) and check
    #     that padded zero rows do not perturb the batch statistics / outputs.
    raw_q, mean_q, inv_q, seg_raw_q = jax.block_until_ready(
        jax.jit(functools.partial(project_bn_stats, seg_length=L, tile_n=48))(img, txt_t))
    assert jnp.allclose(mean_q[:n_cls], mean_p[:n_cls], atol=1e-5)
    assert jnp.allclose(inv_q[:n_cls], inv_p[:n_cls], atol=1e-5)
    assert jnp.allclose(raw_q[:n], raw_p[:n], atol=1e-5)
    assert jnp.allclose(seg_raw_q[: n // L], seg_raw[: n // L], atol=1e-5)

    # (6) output shapes match the torch module.
    assert outs[0].shape == (B * S * L, n_cls)
    assert outs[1].shape == (B * num_topk * L, n_cls)
    assert outs[2].shape == (B * num_bottomk * L, n_cls)
    assert outs[3].shape == (B // 2, num_topk)
    assert outs[4].shape == (B // 2, num_topk)
    assert outs[5].shape == (B // 2, num_bottomk)
    assert logits_eval.shape == (B * S * L, n_cls)

    print("KERNEL_OK")
</pallas_src>

<mosaic_0001>
module attributes {stable_mosaic.version = 11 : i64} {
  func.func @_proj_stats_kernel(%arg0: i32, %arg1: memref<32x32xbf16, #tpu.memory_space<vmem>>, %arg2: memref<32x128xbf16, #tpu.memory_space<vmem>>, %arg3: memref<32x128xf32, #tpu.memory_space<vmem>>, %arg4: memref<8x128xf32, #tpu.memory_space<vmem>>, %arg5: memref<16x128xf32, #tpu.memory_space<vmem>>) attributes {dimension_semantics = [#tpu.dimension_semantics<parallel>], iteration_bounds = array<i64: 2>, scalar_prefetch = 0 : i64, scratch_operands = 0 : i64, tpu.core_type = #tpu.core_type<tc>, window_params = [{transform_indices = @transform_0, window_bounds = array<i64: 32, 32>}, {pipeline_mode = #tpu.pipeline_mode<synchronous>, transform_indices = @transform_1, window_bounds = array<i64: 32, 128>}, {transform_indices = @transform_2, window_bounds = array<i64: 32, 128>}, {transform_indices = @transform_3, window_bounds = array<i64: 8, 128>}, {transform_indices = @transform_4, window_bounds = array<i64: 16, 128>}]} {
    %c0 = arith.constant 0 : index
    %c0_0 = arith.constant 0 : index
    %0 = vector.load %arg1[%c0, %c0_0] : memref<32x32xbf16, #tpu.memory_space<vmem>>, vector<32x32xbf16>
    %c0_1 = arith.constant 0 : index
    %c0_2 = arith.constant 0 : index
    %1 = vector.load %arg2[%c0_1, %c0_2] : memref<32x128xbf16, #tpu.memory_space<vmem>>, vector<32x128xbf16>
    %cst = arith.constant dense<0.000000e+00> : vector<32x128xf32>
    %2 = tpu.matmul %0, %1, %cst {dimension_numbers = #tpu.dot_dimension_numbers<[1], [0], [0], [1], [0, 0, 1, 1], [], []>} : vector<32x32xbf16>, vector<32x128xbf16>, vector<32x128xf32> -> vector<32x128xf32>
    %c0_3 = arith.constant 0 : index
    %c0_4 = arith.constant 0 : index
    %3 = vector.load %arg3[%c0_3, %c0_4] : memref<32x128xf32, #tpu.memory_space<vmem>>, vector<32x128xf32>
    tpu.vector_store %arg3[%c0_3, %c0_4], %2 {strides = array<i32>} : memref<32x128xf32, #tpu.memory_space<vmem>>, vector<32x128xf32>,
    %cst_5 = arith.constant dense<0.000000e+00> : vector<128xf32>
    %4 = vector.multi_reduction <add>, %2, %cst_5 [0] : vector<32x128xf32> to vector<128xf32>
    %5 = vector.shape_cast %4 : vector<128xf32> to vector<1x128xf32>
    %6 = arith.mulf %2, %2 : vector<32x128xf32>
    %cst_6 = arith.constant dense<0.000000e+00> : vector<128xf32>
    %7 = vector.multi_reduction <add>, %6, %cst_6 [0] : vector<32x128xf32> to vector<128xf32>
    %8 = vector.shape_cast %7 : vector<128xf32> to vector<1x128xf32>
    %9 = tpu.iota {dimensions = array<i32: 0>} : vector<8x128xi32>
    %c0_i32 = arith.constant 0 : i32
    %10 = vector.broadcast %c0_i32 : i32 to vector<8x128xi32>
    %11 = arith.cmpi eq, %9, %10 : vector<8x128xi32>
    %cst_7 = arith.constant 0.000000e+00 : f32
    %12 = vector.shape_cast %5 : vector<1x128xf32> to vector<1x128xf32>
    %13 = vector.broadcast %12 : vector<1x128xf32> to vector<8x128xf32>
    %14 = vector.broadcast %cst_7 : f32 to vector<8x128xf32>
    %15 = arith.select %11, %13, %14 : vector<8x128xi1>, vector<8x128xf32>
    %c1_i32 = arith.constant 1 : i32
    %16 = vector.broadcast %c1_i32 : i32 to vector<8x128xi32>
    %17 = arith.cmpi eq, %9, %16 : vector<8x128xi32>
    %cst_8 = arith.constant 0.000000e+00 : f32
    %18 = vector.shape_cast %8 : vector<1x128xf32> to vector<1x128xf32>
    %19 = vector.broadcast %18 : vector<1x128xf32> to vector<8x128xf32>
    %20 = vector.broadcast %cst_8 : f32 to vector<8x128xf32>
    %21 = arith.select %17, %19, %20 : vector<8x128xi1>, vector<8x128xf32>
    %22 = arith.addf %15, %21 : vector<8x128xf32>
    %c0_9 = arith.constant 0 : index
    %c0_10 = arith.constant 0 : index
    %23 = vector.load %arg4[%c0_9, %c0_10] : memref<8x128xf32, #tpu.memory_space<vmem>>, vector<8x128xf32>
    tpu.vector_store %arg4[%c0_9, %c0_10], %22 {strides = array<i32>} : memref<8x128xf32, #tpu.memory_space<vmem>>, vector<8x128xf32>,
    %c0_11 = arith.constant 0 : index
    %c0_12 = arith.constant 0 : index
    %24 = tpu.strided_load %arg3[%c0_11, %c0_12] {strides = array<i32: 2, 1>} : memref<32x128xf32, #tpu.memory_space<vmem>>, vector<16x128xf32>
    %c1 = arith.constant 1 : index
    %c0_13 = arith.constant 0 : index
    %25 = tpu.strided_load %arg3[%c1, %c0_13] {strides = array<i32: 2, 1>} : memref<32x128xf32, #tpu.memory_space<vmem>>, vector<16x128xf32>
    %26 = arith.addf %24, %25 : vector<16x128xf32>
    %c0_14 = arith.constant 0 : index
    %c0_15 = arith.constant 0 : index
    %27 = vector.load %arg5[%c0_14, %c0_15] : memref<16x128xf32, #tpu.memory_space<vmem>>, vector<16x128xf32>
    tpu.vector_store %arg5[%c0_14, %c0_15], %26 {strides = array<i32>} : memref<16x128xf32, #tpu.memory_space<vmem>>, vector<16x128xf32>,
    return
  }
  func.func @transform_0(%arg0: i32) -> (i32, i32) {
    %c0_i32 = arith.constant 0 : i32
    %c0_i32_0 = arith.constant 0 : i32
    return %arg0, %c0_i32 : i32, i32
  }
  func.func @transform_1(%arg0: i32) -> (i32, i32) {
    %c0_i32 = arith.constant 0 : i32
    %c0_i32_0 = arith.constant 0 : i32
    %c0_i32_1 = arith.constant 0 : i32
    return %c0_i32, %c0_i32_0 : i32, i32
  }
  func.func @transform_2(%arg0: i32) -> (i32, i32) {
    %c0_i32 = arith.constant 0 : i32
    %c0_i32_0 = arith.constant 0 : i32
    return %arg0, %c0_i32 : i32, i32
  }
  func.func @transform_3(%arg0: i32) -> (i32, i32) {
    %c0_i32 = arith.constant 0 : i32
    %c0_i32_0 = arith.constant 0 : i32
    return %arg0, %c0_i32 : i32, i32
  }
  func.func @transform_4(%arg0: i32) -> (i32, i32) {
    %c0_i32 = arith.constant 0 : i32
    %c0_i32_0 = arith.constant 0 : i32
    return %arg0, %c0_i32 : i32, i32
  }
}

</mosaic_0001>

<llo_original>
// kernel: neg.2
$region0: #{neg.2}
  #allocation0 [shape = 's32[1]{0}', space=sflag, size = 0x4, scoped, tag = 'scoped memory for neg.2']
  %s0 = inlined_call_operand.vmem [shape: f32[2,8], index: 0, kind: input, shape index: {}]
  %s1 = inlined_call_operand.vmem [shape: f32[2,8], index: 1, kind: output, shape index: {}]
  %v2 = vld [vmem:[%s0] sm:$0x3]
  %3 = xla_tuple %v2
  %4 = xla_tuple %3
  %v5 = vxor.u32 %v2, 2147483648
  %6 = xla_tuple %v5
  %7 = vst [vmem:[%s1] sm:$0x3] %v5

// kernel: selector_forward.1
$region0: #{selector_forward.1}
  #allocation0 [shape = 'u32[]', space=smem, size = 0x4, offset = 0x4, fixed_abs, tag = 'smem constant byte address 0x4 - core index']
  #allocation1 [shape = 'u32[144,128]{1,0:T(1,128)}', space=vmem, size = 0x12000, scoped, tag = 'internal scratch']
  %s0 = inlined_call_operand.vmem [shape: bf16[64,32], index: 0, kind: input, shape index: {}]
  %s1 = inlined_call_operand.vmem [shape: bf16[32,128], index: 1, kind: input, shape index: {}]
  %s2 = inlined_call_operand.vmem [shape: f32[64,128], index: 2, kind: output, shape index: {0}]
  %s3 = inlined_call_operand.vmem [shape: f32[16,128], index: 3, kind: output, shape index: {1}]
  %s4 = inlined_call_operand.vmem [shape: f32[32,128], index: 4, kind: output, shape index: {2}]
  %5 = xla_tuple %s2, %s3, %s4
  %s6 = sld [smem:[#allocation0]]
  $region57: #{selector_forward.1} parent=0
    _
  %s8 = ssub.s32 1, %s6
  %s9 = scalar_select 0, %s8, %s6
  loop: start=0, step=1, limit=4
  $region2: #{selector_forward.1} parent=0 // loop_pre_header
    _
  $region3: #{selector_forward.1} parent=0 // loop_header
    %s11 = sphi 0, %s15
    %p12 = scmp.ge.s32.totalorder %s11, 4
    %s21 = sphi 0, %s23
    %s24 = sphi 0, %s21
    %s25 = sphi 0, %s24
    %s41 = sphi 0, %s25
    %s45 = sphi 0, %s45
    %s47 = sphi 0, %s45
    %s48 = sphi 0, %s47
    %s62 = sphi 0, %s48
    %s68 = sphi 0, %s70
    %s71 = sphi 0, %s68
    %s72 = sphi 0, %s71
    %s88 = sphi 0, %s72
    %s94 = sphi 0, %s96
    %s97 = sphi 0, %s94
    %s98 = sphi 0, %s97
    %s114 = sphi 0, %s98
    %s120 = sphi 0, %s122
    %s123 = sphi 0, %s120
    %s124 = sphi 0, %s123
    %s140 = sphi 0, %s124
  $region4: #{selector_forward.1} parent=0 // loop_header_branch
    %14 = sbr.rel (%p12) target = $region8
  $region5: #{selector_forward.1} parent=0 // loop_body
    %s16 = ssub.s32 %s11, 1
    %s17 = ssub.s32 %s11, 2
    %s18 = sadd.s32 %s11, 1
    %s19 = ssub.s32 %s11, %s18
    %p20 = scmp.eq.s32.totalorder %s19, 0
    %s22 = sadd.s32 %s21, 1
    %s23 = scalar_select %p20, %s21, %s22
    %p26 = pneg %p20
    %p27 = scmp.eq.s32.totalorder %s11, 1
    %p28 = por %p26, %p27
    %p29 = scmp.ne.s32.totalorder %s21, %s24
    %p30 = scmp.eq.s32.totalorder %s11, 0
    %p31 = por %p29, %p30
    %p32 = scmp.ne.s32.totalorder %s21, %s24
    %p33 = scmp.eq.s32.totalorder %s16, 1
    %p34 = por %p32, %p33
    %p35 = scmp.ne.s32.totalorder %s24, %s25
    %p36 = scmp.eq.s32.totalorder %s16, 0
    %p37 = por %p35, %p36
    %p38 = scmp.ne.s32.totalorder %s24, %s25
    %p39 = scmp.eq.s32.totalorder %s17, 1
    %p40 = por %p38, %p39
    %p42 = scmp.ne.s32.totalorder %s25, %s41
    %p43 = scmp.eq.s32.totalorder %s17, 0
    %p44 = por %p42, %p43
    %s46 = sadd.s32 %s45, 1
    %p49 = scmp.eq.s32.totalorder %s11, 1
    %p50 = scmp.ne.s32.totalorder %s45, %s47
    %p51 = scmp.eq.s32.totalorder %s11, 0
    %p52 = por %p50, %p51
    %p53 = scmp.ne.s32.totalorder %s45, %s47
    %p54 = scmp.eq.s32.totalorder %s16, 1
    %p55 = por %p53, %p54
    %p56 = scmp.ne.s32.totalorder %s47, %s48
    %p57 = scmp.eq.s32.totalorder %s16, 0
    %p58 = por %p56, %p57
    %p59 = scmp.ne.s32.totalorder %s47, %s48
    %p60 = scmp.eq.s32.totalorder %s17, 1
    %p61 = por %p59, %p60
    %p63 = scmp.ne.s32.totalorder %s48, %s62
    %p64 = scmp.eq.s32.totalorder %s17, 0
    %p65 = por %p63, %p64
    %s66 = ssub.s32 %s11, %s18
    %p67 = scmp.eq.s32.totalorder %s66, 0
    %s69 = sadd.s32 %s68, 1
    %s70 = scalar_select %p67, %s68, %s69
    %p73 = pneg %p67
    %p74 = scmp.eq.s32.totalorder %s11, 1
    %p75 = por %p73, %p74
    %p76 = scmp.ne.s32.totalorder %s68, %s71
    %p77 = scmp.eq.s32.totalorder %s11, 0
    %p78 = por %p76, %p77
    %p79 = scmp.ne.s32.totalorder %s68, %s71
    %p80 = scmp.eq.s32.totalorder %s16, 1
    %p81 = por %p79, %p80
    %p82 = scmp.ne.s32.totalorder %s71, %s72
    %p83 = scmp.eq.s32.totalorder %s16, 0
    %p84 = por %p82, %p83
    %p85 = scmp.ne.s32.totalorder %s71, %s72
    %p86 = scmp.eq.s32.totalorder %s17, 1
    %p87 = por %p85, %p86
    %p89 = scmp.ne.s32.totalorder %s72, %s88
    %p90 = scmp.eq.s32.totalorder %s17, 0
    %p91 = por %p89, %p90
    %s92 = ssub.s32 %s11, %s18
    %p93 = scmp.eq.s32.totalorder %s92, 0
    %s95 = sadd.s32 %s94, 1
    %s96 = scalar_select %p93, %s94, %s95
    %p99 = pneg %p93
    %p100 = scmp.eq.s32.totalorder %s11, 1
    %p101 = por %p99, %p100
    %p102 = scmp.ne.s32.totalorder %s94, %s97
    %p103 = scmp.eq.s32.totalorder %s11, 0
    %p104 = por %p102, %p103
    %p105 = scmp.ne.s32.totalorder %s94, %s97
    %p106 = scmp.eq.s32.totalorder %s16, 1
    %p107 = por %p105, %p106
    %p108 = scmp.ne.s32.totalorder %s97, %s98
    %p109 = scmp.eq.s32.totalorder %s16, 0
    %p110 = por %p108, %p109
    %p111 = scmp.ne.s32.totalorder %s97, %s98
    %p112 = scmp.eq.s32.totalorder %s17, 1
    %p113 = por %p111, %p112
    %p115 = scmp.ne.s32.totalorder %s98, %s114
    %p116 = scmp.eq.s32.totalorder %s17, 0
    %p117 = por %p115, %p116
    %s118 = ssub.s32 %s11, %s18
    %p119 = scmp.eq.s32.totalorder %s118, 0
    %s121 = sadd.s32 %s120, 1
    %s122 = scalar_select %p119, %s120, %s121
    %p125 = pneg %p119
    %p126 = scmp.eq.s32.totalorder %s11, 1
    %p127 = por %p125, %p126
    %p128 = scmp.ne.s32.totalorder %s120, %s123
    %p129 = scmp.eq.s32.totalorder %s11, 0
    %p130 = por %p128, %p129
    %p131 = scmp.ne.s32.totalorder %s120, %s123
    %p132 = scmp.eq.s32.totalorder %s16, 1
    %p133 = por %p131, %p132
    %p134 = scmp.ne.s32.totalorder %s123, %s124
    %p135 = scmp.eq.s32.totalorder %s16, 0
    %p136 = por %p134, %p135
    %p137 = scmp.ne.s32.totalorder %s123, %s124
    %p138 = scmp.eq.s32.totalorder %s17, 1
    %p139 = por %p137, %p138
    %p141 = scmp.ne.s32.totalorder %s124, %s140
    %p142 = scmp.eq.s32.totalorder %s17, 0
    %p143 = por %p141, %p142
    %p144 = scmp.le.s32.totalorder 1, %s11
    %p145 = scmp.lt.s32.totalorder %s11, 3
    %p146 = pnand %p144, %p145
    %p147 = pneg %p146
    // Predicated region
    $region9: #{selector_forward.1} parent=5 // pred_check
      _
    $region10: #{selector_forward.1} parent=5 // pred_check_branch
      %149 = sbr.rel (%p146) target = $region12
    $region11: #{selector_forward.1} parent=5 // pred_region
      %s150 = ssub.s32 %s11, 1
      // Predicated region
      $region13: #{selector_forward.1} parent=11 // pred_check
        %p151 = pneg %p58
      $region14: #{selector_forward.1} parent=11 // pred_check_branch
        %153 = sbr.rel (%p151) target = $region16
      $region15: #{selector_forward.1} parent=11 // pred_region
        _
      $region16: #{selector_forward.1} parent=11 // pred_fallthru
        _
    $region12: #{selector_forward.1} parent=5 // pred_fallthru
      _
    %p154 = scmp.lt.s32.totalorder %s11, 2
    // Predicated region
    $region17: #{selector_forward.1} parent=5 // pred_check
      %p155 = pneg %p154
    $region18: #{selector_forward.1} parent=5 // pred_check_branch
      %157 = sbr.rel (%p155) target = $region20
    $region19: #{selector_forward.1} parent=5 // pred_region
      // Predicated region
      $region21: #{selector_forward.1} parent=19 // pred_check
        %p158 = pneg %p31
      $region22: #{selector_forward.1} parent=19 // pred_check_branch
        %160 = sbr.rel (%p158) target = $region24
      $region23: #{selector_forward.1} parent=19 // pred_region
        %s161 = smul.u32 4, %s11
        %p162 = scmp.lt.s32.totalorder %s161, 7
        %s163 = scalar_select %p162, %s161, 7
        %s164 = smul.addr %s163, 4
        %s165 = scalar_lea.vmem %s0, %s164
        %s166 = smul.u32 4, %s11
      $region24: #{selector_forward.1} parent=19 // pred_fallthru
        _
    $region20: #{selector_forward.1} parent=5 // pred_fallthru
      _
    %p167 = scmp.le.s32.totalorder 1, %s11
    %p168 = scmp.lt.s32.totalorder %s11, 3
    %p169 = pnand %p167, %p168
    %p170 = pneg %p169
    // Predicated region
    $region25: #{selector_forward.1} parent=5 // pred_check
      _
    $region26: #{selector_forward.1} parent=5 // pred_check_branch
      %172 = sbr.rel (%p169) target = $region28
    $region27: #{selector_forward.1} parent=5 // pred_region
      %s173 = ssub.s32 %s11, 1
      %s174 = smul.u32 4, %s16
      %p175 = scmp.lt.s32.totalorder %s174, 7
      %s176 = scalar_select %p175, %s174, 7
      %s177 = smul.addr %s176, 4
      %s178 = scalar_lea.vmem %s0, %s177
      %p179 = pneg %p37
      %p180 = pneg %p34
      %p181 = pneg %p58
      %p182 = pneg %p55
      %p183 = pneg %p84
      %p184 = pneg %p81
      %s185 = smul.u32 4, %s16
      %p186 = scmp.lt.s32.totalorder %s185, 7
      %s187 = scalar_select %p186, %s185, 7
      %s188 = smul.addr %s187, 8
      %s189 = scalar_lea.vmem %s2, %s188
      %p190 = pneg %p110
      %p191 = pneg %p107
      %p192 = scmp.lt.s32.totalorder %s16, 1
      %s193 = scalar_select %p192, %s16, 1
      %s194 = smul.addr %s193, 8
      %s195 = scalar_lea.vmem %s3, %s194
      %p196 = pneg %p136
      %p197 = pneg %p133
      %s198 = smul.u32 2, %s16
      %p199 = scmp.lt.s32.totalorder %s198, 3
      %s200 = scalar_select %p199, %s198, 3
      %s201 = smul.addr %s200, 8
      %s202 = scalar_lea.vmem %s4, %s201
      %s203 = smul.u32 4, %s16
      %p204 = scmp.lt.s32.totalorder %s203, 7
      %s205 = scalar_select %p204, %s203, 7
      %s206 = smul.addr %s205, 4
      %s207 = scalar_lea.vmem %s0, %s206
      %s208 = smul.u32 4, %s16
      %s209 = smul.u32 4, %s16
      %p210 = scmp.lt.s32.totalorder %s209, 7
      %s211 = scalar_select %p210, %s209, 7
      %s212 = smul.addr %s211, 8
      %s213 = scalar_lea.vmem %s2, %s212
      %s214 = smul.u32 4, %s16
      %p215 = scmp.lt.s32.totalorder %s16, 1
      %s216 = scalar_select %p215, %s16, 1
      %s217 = smul.addr %s216, 8
      %s218 = scalar_lea.vmem %s3, %s217
      %s219 = smul.u32 2, %s16
      %p220 = scmp.lt.s32.totalorder %s219, 3
      %s221 = scalar_select %p220, %s219, 3
      %s222 = smul.addr %s221, 8
      %s223 = scalar_lea.vmem %s4, %s222
      %s224 = smul.u32 2, %s16
      %v226 = vld [vmem:[%s207] sm:$0xf]
      %v227 = vld [vmem:[%s207 + $0x4] sm:$0xf]
      %v228 = vld [vmem:[%s207 + $0x8] sm:$0xf]
      %v229 = vld [vmem:[%s207 + $0xc] sm:$0xf]
      %v230 = vld [vmem:[%s1] sm:$0xf]
      %v231 = vld [vmem:[%s1 + $0x4] sm:$0xf]
      %v232 = vld [vmem:[%s1 + $0x8] sm:$0xf]
      %v233 = vld [vmem:[%s1 + $0xc] sm:$0xf]
      %v238 = vunpack.c.l.b16 %v226
      %v239 = vunpack.c.l.b16 %v227
      %v240 = vunpack.c.l.b16 %v228
      %v241 = vunpack.c.l.b16 %v229
      %v242 = vpack.c.b16 %v239, %v238
      %v243 = vpack.c.b16 %v241, %v240
      %v248 = vunpack.c.l.b16 %v230
      %v249 = vunpack.c.l.b16 %v231
      %v250 = vunpack.c.l.b16 %v232
      %v251 = vunpack.c.l.b16 %v233
      %v252 = vpack.c.b16 %v249, %v248
      %v253 = vpack.c.b16 %v251, %v250
      %vm256 = vcmask 261120
      %v258 = vsel %vm256, %v242, 0
      %v261 = vsel %vm256, %v243, 0
      %263 = vmatprep.subr.bf16.mxu0 0
      %264 = vmatpush1.bf16.msra.mxu0 %v252
      %265 = vmatprep.subr.bf16.mxu0 0
      %266 = vmatpush1.bf16.msra.mxu0 %v253
      %267 = vmatprep.subr.bf16.mxu0 0
      %268 = vmatpush1.bf16.msra.mxu0 0
      %269 = vmatprep.subr.bf16.mxu0 0
      %270 = vmatpush1.bf16.msra.mxu0 0
      %271 = vmatprep.subr.bf16.mxu0 0
      %272 = vmatpush1.bf16.msra.mxu0 0
      %273 = vmatprep.subr.bf16.mxu0 0
      %274 = vmatpush1.bf16.msra.mxu0 0
      %275 = vmatprep.subr.bf16.mxu0 0
      %276 = vmatpush1.bf16.msra.mxu0 0
      %277 = vmatprep.subr.bf16.mxu0 0
      %278 = vmatpush1.bf16.msra.mxu0 0
      %279 = vmatprep.subr.bf16.mxu0 0
      %280 = vmatpush1.bf16.msra.mxu0 0
      %281 = vmatprep.subr.bf16.mxu0 0
      %282 = vmatpush1.bf16.msra.mxu0 0
      %283 = vmatprep.subr.bf16.mxu0 0
      %284 = vmatpush1.bf16.msra.mxu0 0
      %285 = vmatprep.subr.bf16.mxu0 0
      %286 = vmatpush1.bf16.msra.mxu0 0
      %287 = vmatprep.subr.bf16.mxu0 0
      %288 = vmatpush1.bf16.msra.mxu0 0
      %289 = vmatprep.subr.bf16.mxu0 0
      %290 = vmatpush1.bf16.msra.mxu0 0
      %291 = vmatprep.subr.bf16.mxu0 0
      %292 = vmatpush1.bf16.msra.mxu0 0
      %293 = vmatprep.subr.bf16.mxu0 0
      %294 = vmatpush1.bf16.msra.mxu0 0
      %295 = vmatprep.mubr.bf16.mxu0 0
      %296 = vmatmul.mubr.bf16.gmra.mrb[0].mxu0 %v258
      %v297 = vpop.f32.mrb[0].mxu0
      %v298 = vadd.f32 0.0, %v297
      %v299 = vpop.f32.mrb[0].mxu0
      %v300 = vpop.f32.mrb[0].mxu0
      %v301 = vadd.f32 0.0, %v300
      %v302 = vpop.f32.mrb[0].mxu0
      %303 = vmatprep.mubr.bf16.mxu0 0
      %304 = vmatmul.mubr.bf16.gmra.mrb[0].mxu0 %v261
      %v305 = vpop.f32.mrb[0].mxu0
      %v306 = vadd.f32 0.0, %v305
      %v307 = vpop.f32.mrb[0].mxu0
      %v308 = vpop.f32.mrb[0].mxu0
      %v309 = vadd.f32 0.0, %v308
      %v310 = vpop.f32.mrb[0].mxu0
      %311 = vdwg.mxu0
      %312 = vst [vmem:[%s213] sm:$0xff] %v298
      %313 = vst [vmem:[%s213 + $0x8] sm:$0xff] %v301
      %314 = vst [vmem:[%s213 + $0x10] sm:$0xff] %v306
      %315 = vst [vmem:[%s213 + $0x18] sm:$0xff] %v309
      %v316 = vadd.f32 %v298, %v301
      %v317 = vadd.f32 %v316, %v306
      %v318 = vadd.f32 %v317, %v309
      %v319 = vrot.slane %v318, 4
      %v320 = vadd.f32 %v318, %v319
      %v321 = vrot.slane %v320, 2
      %v322 = vadd.f32 %v320, %v321
      %v323 = vrot.slane %v322, 1
      %v324 = vadd.f32 %v322, %v323
      %v325 = vmul.f32 %v298, %v298
      %v326 = vmul.f32 %v301, %v301
      %v327 = vmul.f32 %v306, %v306
      %v328 = vmul.f32 %v309, %v309
      %v329 = vadd.f32 %v325, %v326
      %v330 = vadd.f32 %v329, %v327
      %v331 = vadd.f32 %v330, %v328
      %v332 = vrot.slane %v331, 4
      %v333 = vadd.f32 %v331, %v332
      %v334 = vrot.slane %v333, 2
      %v335 = vadd.f32 %v333, %v334
      %v336 = vrot.slane %v335, 1
      %v337 = vadd.f32 %v335, %v336
      %v338 = vlaneseq
      %v339 = vshrl.u32 %v338, 7
      %vm340 = vcmp.eq.s32.totalorder %v339, 0
      %v341 = vsel %vm340, %v324, 0.0
      %vm342 = vcmp.eq.s32.totalorder %v339, 1
      %v343 = vsel %vm342, %v337, 0.0
      %v344 = vadd.f32 %v341, %v343
      %345 = vst [vmem:[%s218] sm:$0xff] %v344
      %v346 = vld [vmem:[%s213] ss:$2 sm:$0xff]
      %s347 = scalar_lea.vmem %s213, 16
      %v348 = vld [vmem:[%s347] ss:$2 sm:$0xff]
      %s349 = scalar_lea.vmem %s213, 1
      %v350 = vld [vmem:[%s349] ss:$2 sm:$0xff]
      %s351 = scalar_lea.vmem %s213, 17
      %v352 = vld [vmem:[%s351] ss:$2 sm:$0xff]
      %v353 = vadd.f32 %v346, %v350
      %v354 = vadd.f32 %v348, %v352
      %355 = vst [vmem:[%s223] sm:$0xff] %v353
      %356 = vst [vmem:[%s223 + $0x8] sm:$0xff] %v354
      %s357 = smul.u32 4, %s16
      %p358 = scmp.lt.s32.totalorder %s357, 7
      %s359 = scalar_select %p358, %s357, 7
      %s360 = smul.addr %s359, 8
      %s361 = scalar_lea.vmem %s2, %s360
      %p362 = scmp.lt.s32.totalorder %s16, 1
      %s363 = scalar_select %p362, %s16, 1
      %s364 = smul.addr %s363, 8
      %s365 = scalar_lea.vmem %s3, %s364
      %s366 = smul.u32 2, %s16
      %p367 = scmp.lt.s32.totalorder %s366, 3
      %s368 = scalar_select %p367, %s366, 3
      %s369 = smul.addr %s368, 8
      %s370 = scalar_lea.vmem %s4, %s369
      // Predicated region
      $region29: #{selector_forward.1} parent=27 // pred_check
        %p371 = pneg %p81
      $region30: #{selector_forward.1} parent=27 // pred_check_branch
        %373 = sbr.rel (%p371) target = $region32
      $region31: #{selector_forward.1} parent=27 // pred_region
        %s374 = smul.u32 4, %s16
      $region32: #{selector_forward.1} parent=27 // pred_fallthru
        _
      // Predicated region
      $region33: #{selector_forward.1} parent=27 // pred_check
        %p375 = pneg %p107
      $region34: #{selector_forward.1} parent=27 // pred_check_branch
        %377 = sbr.rel (%p375) target = $region36
      $region35: #{selector_forward.1} parent=27 // pred_region
        _
      $region36: #{selector_forward.1} parent=27 // pred_fallthru
        _
      // Predicated region
      $region37: #{selector_forward.1} parent=27 // pred_check
        %p378 = pneg %p133
      $region38: #{selector_forward.1} parent=27 // pred_check_branch
        %380 = sbr.rel (%p378) target = $region40
      $region39: #{selector_forward.1} parent=27 // pred_region
        %s381 = smul.u32 2, %s16
      $region40: #{selector_forward.1} parent=27 // pred_fallthru
        _
    $region28: #{selector_forward.1} parent=5 // pred_fallthru
      _
    %p382 = scmp.le.s32.totalorder 2, %s11
    // Predicated region
    $region41: #{selector_forward.1} parent=5 // pred_check
      %p383 = pneg %p382
    $region42: #{selector_forward.1} parent=5 // pred_check_branch
      %385 = sbr.rel (%p383) target = $region44
    $region43: #{selector_forward.1} parent=5 // pred_region
      %s386 = ssub.s32 %s11, 2
      // Predicated region
      $region45: #{selector_forward.1} parent=43 // pred_check
        %p387 = pneg %p87
      $region46: #{selector_forward.1} parent=43 // pred_check_branch
        %389 = sbr.rel (%p387) target = $region48
      $region47: #{selector_forward.1} parent=43 // pred_region
        %s390 = smul.u32 4, %s17
        %p391 = scmp.lt.s32.totalorder %s390, 7
        %s392 = scalar_select %p391, %s390, 7
        %s393 = smul.addr %s392, 8
        %s394 = scalar_lea.vmem %s2, %s393
      $region48: #{selector_forward.1} parent=43 // pred_fallthru
        _
      // Predicated region
      $region49: #{selector_forward.1} parent=43 // pred_check
        %p395 = pneg %p113
      $region50: #{selector_forward.1} parent=43 // pred_check_branch
        %397 = sbr.rel (%p395) target = $region52
      $region51: #{selector_forward.1} parent=43 // pred_region
        %p398 = scmp.lt.s32.totalorder %s17, 1
        %s399 = scalar_select %p398, %s17, 1
        %s400 = smul.addr %s399, 8
        %s401 = scalar_lea.vmem %s3, %s400
      $region52: #{selector_forward.1} parent=43 // pred_fallthru
        _
      // Predicated region
      $region53: #{selector_forward.1} parent=43 // pred_check
        %p402 = pneg %p139
      $region54: #{selector_forward.1} parent=43 // pred_check_branch
        %404 = sbr.rel (%p402) target = $region56
      $region55: #{selector_forward.1} parent=43 // pred_region
        %s405 = smul.u32 2, %s17
        %p406 = scmp.lt.s32.totalorder %s405, 3
        %s407 = scalar_select %p406, %s405, 3
        %s408 = smul.addr %s407, 8
        %s409 = scalar_lea.vmem %s4, %s408
      $region56: #{selector_forward.1} parent=43 // pred_fallthru
        _
    $region44: #{selector_forward.1} parent=5 // pred_fallthru
      _
  $region6: #{selector_forward.1} parent=0 // loop_footer
    %s15 = sadd.s32 1, %s11
  $region7: #{selector_forward.1} parent=0 // loop_footer_branch
    %10 = sbr.rel target = $region3
  $region8: #{selector_forward.1} parent=0 // loop_exit
    _

</llo_original>
